<compile_context>
chip_gen: v7x
topology: tpu7x:2x2x1
jax: 0.10.0
libtpu: 0.0.40
codegen_flags: <defaults>
</compile_context>

<pallas_src>
import jax
import jax.numpy as jnp
from jax import lax
from jax.experimental import pallas as pl
from jax.experimental.pallas import tpu as pltpu

KH = KW = 3
EPS = 1e-5


def _downblock_kernel(x_ref, w_ref, p_ref, o_ref, pool_ref, patch_ref):
    # x_ref     : (1, 2, 2, Hp, Wp, C_in)   VMEM bf16  pool-window-major, chans-last
    # w_ref     : (9*C_in, C_out)           VMEM bf16  im2col conv weights
    # p_ref     : (3, C_out)                VMEM f32   [conv bias; LN gamma; LN beta]
    # o_ref     : (1, Hp*Wp, C_out)         VMEM f32   output block
    # pool_ref  : (Hp+2, Wp+2, C_in)        VMEM bf16  scratch: pooled map + zero halo
    # patch_ref : (Hp, Wp, 9*C_in)          VMEM bf16  scratch: im2col operand
    Hp, Wp, C_in = x_ref.shape[3], x_ref.shape[4], x_ref.shape[5]
    C_out = o_ref.shape[2]
    HW = Hp * Wp

    # ---- [R1] max-pool 2x2 / stride 2 directly on the bf16 slabs -------------
    pooled = jnp.maximum(
        jnp.maximum(x_ref[0, 0, 0], x_ref[0, 0, 1]),
        jnp.maximum(x_ref[0, 1, 0], x_ref[0, 1, 1]))        # (Hp, Wp, C_in) bf16

    # ---- [R6] 1-px zero conv halo synthesized in VMEM (no HBM pad pass) ------
    pool_ref[...] = jnp.zeros_like(pool_ref)
    pool_ref[1:Hp + 1, 1:Wp + 1, :] = pooled
    padded = pool_ref[...]                                   # (Hp+2, Wp+2, C_in)

    # ---- [R2] im2col: build one (HW, 9*C_in) operand, ONE MXU matmul ---------
    idx = 0
    for kh in range(KH):
        for kw in range(KW):
            patch_ref[:, :, idx * C_in:(idx + 1) * C_in] = \
                padded[kh:kh + Hp, kw:kw + Wp, :]
            idx += 1
    patch = patch_ref[...].reshape(HW, KH * KW * C_in)       # bf16 MXU operand
    acc = jnp.dot(patch, w_ref[...],
                  preferred_element_type=jnp.float32)        # (HW, C_out) f32

    # ---- LayerNorm over (C,H,W): two-pass stats, scale/shift apply [R11] -----
    bias, gamma, beta = p_ref[0:1], p_ref[1:2], p_ref[2:3]   # each (1, C_out) f32
    cnt = float(HW * C_out)
    mean = (jnp.sum(acc) + HW * jnp.sum(bias)) * (1.0 / cnt)   # mean of conv+bias
    centered = acc + (bias - mean)                             # 1 fused VPU pass
    var = jnp.sum(centered * centered) * (1.0 / cnt)           # two-pass variance
    inv = lax.rsqrt(var + EPS)
    y = centered * (gamma * inv) + beta                        # per-channel affine

    # ---- ReLU + single full-block store ---------------------------------------
    o_ref[0] = jnp.maximum(y, 0.0).astype(o_ref.dtype)


def downblock_forward(x, conv_w, conv_b, ln_gamma, ln_beta):
    """x: (N, C_in, H, W) float32 (NCHW). Returns (N, C_out, H//2, W//2) f32."""
    N, C_in, H, W = x.shape
    C_out = conv_w.shape[0]
    assert H % 2 == 0 and W % 2 == 0
    Hp, Wp = H // 2, W // 2

    # [R1][R6] ONE fused transpose+cast: NCHW -> (N, 2, 2, Hp, Wp, C_in) bf16,
    # pool-window-major / channels-last.  No jnp.pad (halo built in VMEM), and
    # half the bytes of the previous f32 transpose+pad round trip.
    x6 = (x.reshape(N, C_in, Hp, 2, Wp, 2)
           .transpose(0, 3, 5, 2, 4, 1)
           .astype(jnp.bfloat16))

    # [R2] conv weights OIHW -> (kh, kw, C_in, C_out) -> (9*C_in, C_out) bf16.
    w2 = (conv_w.transpose(2, 3, 1, 0)
                .reshape(KH * KW * C_in, C_out)
                .astype(jnp.bfloat16))
    # [R11] merged per-channel params: rows = [conv bias; LN gamma; LN beta].
    params = jnp.stack([conv_b, ln_gamma, ln_beta]).astype(jnp.float32)

    # vmem limit with headroom (demo -> 32 MiB; capped so it is valid on v7x).
    blk_in = 2 * 2 * Hp * Wp * C_in * 2
    blk_w = KH * KW * C_in * C_out * 2
    blk_p = 3 * C_out * 4
    blk_out = Hp * Wp * C_out * 4
    scratch = (Hp + 2) * (Wp + 2) * C_in * 2 + Hp * Wp * KH * KW * C_in * 2
    est = 2 * (blk_in + blk_w + blk_p + blk_out) + scratch   # double-buffered
    vmem_limit = int(min(64 * 2**20, max(32 * 2**20, 4 * est)))

    out = pl.pallas_call(
        _downblock_kernel,
        out_shape=jax.ShapeDtypeStruct((N, Hp * Wp, C_out), jnp.float32),
        grid=(N,),
        in_specs=[
            pl.BlockSpec((1, 2, 2, Hp, Wp, C_in),
                         lambda n: (n, 0, 0, 0, 0, 0)),
            pl.BlockSpec((KH * KW * C_in, C_out), lambda n: (0, 0)),
            pl.BlockSpec((3, C_out), lambda n: (0, 0)),
        ],
        out_specs=pl.BlockSpec((1, Hp * Wp, C_out), lambda n: (n, 0, 0)),
        scratch_shapes=[
            pltpu.VMEM((Hp + 2, Wp + 2, C_in), jnp.bfloat16),
            pltpu.VMEM((Hp, Wp, KH * KW * C_in), jnp.bfloat16),
        ],
        compiler_params=pltpu.CompilerParams(
            dimension_semantics=("parallel",),
            vmem_limit_bytes=vmem_limit),
    )(x6, w2, params)

    # Lane-dense (N, Hp*Wp, C_out) -> public NCHW.
    return out.reshape(N, Hp, Wp, C_out).transpose(0, 3, 1, 2)


def _reference(x, conv_w, conv_b, gamma, beta):
    """Pure-JAX reference (bf16 conv operands, f32 accumulate, f32 LN)."""
    p = lax.reduce_window(x, -jnp.inf, lax.max,
                          window_dimensions=(1, 1, 2, 2),
                          window_strides=(1, 1, 2, 2),
                          padding="VALID")
    y = lax.conv_general_dilated(p.astype(jnp.bfloat16),
                                 conv_w.astype(jnp.bfloat16),
                                 window_strides=(1, 1),
                                 padding=((1, 1), (1, 1)),
                                 dimension_numbers=("NCHW", "OIHW", "NCHW"),
                                 preferred_element_type=jnp.float32)
    y = y + conv_b[None, :, None, None]
    mean = jnp.mean(y, axis=(1, 2, 3), keepdims=True)
    var = jnp.var(y, axis=(1, 2, 3), keepdims=True)
    yn = (y - mean) * lax.rsqrt(var + EPS)
    yn = yn * gamma[None, :, None, None] + beta[None, :, None, None]
    return jnp.maximum(yn, 0.0)


if __name__ == "__main__":
    key = jax.random.PRNGKey(0)
    kx, kw, kb = jax.random.split(key, 3)

    N, C_in, H, W = 2, 4, 16, 16
    C_out = 8

    x = jax.random.normal(kx, (N, C_in, H, W), jnp.float32)
    conv_w = jax.random.normal(kw, (C_out, C_in, 3, 3), jnp.float32) * 0.1
    conv_b = jax.random.normal(kb, (C_out,), jnp.float32) * 0.1
    ln_gamma = jnp.ones((C_out,), jnp.float32)   # PyTorch norm default weight
    ln_beta = jnp.zeros((C_out,), jnp.float32)   # PyTorch norm default bias

    out = downblock_forward(x, conv_w, conv_b, ln_gamma, ln_beta)
    out = jax.block_until_ready(out)

    ref = _reference(x, conv_w, conv_b, ln_gamma, ln_beta)
    assert out.shape == (N, C_out, H // 2, W // 2), out.shape
    assert jnp.allclose(out, ref, atol=1e-3, rtol=1e-3), \
        float(jnp.max(jnp.abs(out - ref)))
    print("KERNEL_OK")
</pallas_src>

<mosaic_0001>
module attributes {stable_mosaic.version = 11 : i64} {
  func.func @_downblock_kernel(%arg0: i32, %arg1: memref<1x2x2x8x8x4xbf16, #tpu.memory_space<vmem>>, %arg2: memref<36x8xbf16, #tpu.memory_space<vmem>>, %arg3: memref<3x8xf32, #tpu.memory_space<vmem>>, %arg4: memref<1x64x8xf32, #tpu.memory_space<vmem>>, %arg5: memref<10x10x4xbf16, #tpu.memory_space<vmem>>, %arg6: memref<8x8x36xbf16, #tpu.memory_space<vmem>>) attributes {dimension_semantics = [#tpu.dimension_semantics<parallel>], iteration_bounds = array<i64: 2>, scalar_prefetch = 0 : i64, scratch_operands = 2 : i64, tpu.core_type = #tpu.core_type<tc>, window_params = [{transform_indices = @transform_0, window_bounds = array<i64: 1, 2, 2, 8, 8, 4>}, {pipeline_mode = #tpu.pipeline_mode<synchronous>, transform_indices = @transform_1, window_bounds = array<i64: 36, 8>}, {pipeline_mode = #tpu.pipeline_mode<synchronous>, transform_indices = @transform_2, window_bounds = array<i64: 3, 8>}, {transform_indices = @transform_3, window_bounds = array<i64: 1, 64, 8>}]} {
    %c0 = arith.constant 0 : index
    %c0_0 = arith.constant 0 : index
    %c0_1 = arith.constant 0 : index
    %c0_2 = arith.constant 0 : index
    %c0_3 = arith.constant 0 : index
    %c0_4 = arith.constant 0 : index
    %0 = vector.load %arg1[%c0, %c0_0, %c0_1, %c0_2, %c0_3, %c0_4] : memref<1x2x2x8x8x4xbf16, #tpu.memory_space<vmem>>, vector<1x1x1x8x8x4xbf16>
    %1 = vector.shape_cast %0 : vector<1x1x1x8x8x4xbf16> to vector<8x8x4xbf16>
    %c0_5 = arith.constant 0 : index
    %c0_6 = arith.constant 0 : index
    %c1 = arith.constant 1 : index
    %c0_7 = arith.constant 0 : index
    %c0_8 = arith.constant 0 : index
    %c0_9 = arith.constant 0 : index
    %2 = vector.load %arg1[%c0_5, %c0_6, %c1, %c0_7, %c0_8, %c0_9] : memref<1x2x2x8x8x4xbf16, #tpu.memory_space<vmem>>, vector<1x1x1x8x8x4xbf16>
    %3 = vector.shape_cast %2 : vector<1x1x1x8x8x4xbf16> to vector<8x8x4xbf16>
    %4 = arith.maximumf %1, %3 : vector<8x8x4xbf16>
    %c0_10 = arith.constant 0 : index
    %c1_11 = arith.constant 1 : index
    %c0_12 = arith.constant 0 : index
    %c0_13 = arith.constant 0 : index
    %c0_14 = arith.constant 0 : index
    %c0_15 = arith.constant 0 : index
    %5 = vector.load %arg1[%c0_10, %c1_11, %c0_12, %c0_13, %c0_14, %c0_15] : memref<1x2x2x8x8x4xbf16, #tpu.memory_space<vmem>>, vector<1x1x1x8x8x4xbf16>
    %6 = vector.shape_cast %5 : vector<1x1x1x8x8x4xbf16> to vector<8x8x4xbf16>
    %c0_16 = arith.constant 0 : index
    %c1_17 = arith.constant 1 : index
    %c1_18 = arith.constant 1 : index
    %c0_19 = arith.constant 0 : index
    %c0_20 = arith.constant 0 : index
    %c0_21 = arith.constant 0 : index
    %7 = vector.load %arg1[%c0_16, %c1_17, %c1_18, %c0_19, %c0_20, %c0_21] : memref<1x2x2x8x8x4xbf16, #tpu.memory_space<vmem>>, vector<1x1x1x8x8x4xbf16>
    %8 = vector.shape_cast %7 : vector<1x1x1x8x8x4xbf16> to vector<8x8x4xbf16>
    %9 = arith.maximumf %6, %8 : vector<8x8x4xbf16>
    %10 = arith.maximumf %4, %9 : vector<8x8x4xbf16>
    %cst = arith.constant 0.000000e+00 : bf16
    %11 = vector.broadcast %cst : bf16 to vector<10x10x4xbf16>
    %c0_22 = arith.constant 0 : index
    %c0_23 = arith.constant 0 : index
    %c0_24 = arith.constant 0 : index
    %12 = vector.load %arg5[%c0_22, %c0_23, %c0_24] : memref<10x10x4xbf16, #tpu.memory_space<vmem>>, vector<10x10x4xbf16>
    tpu.vector_store %arg5[%c0_22, %c0_23, %c0_24], %11 {strides = array<i32>} : memref<10x10x4xbf16, #tpu.memory_space<vmem>>, vector<10x10x4xbf16>,
    %c1_25 = arith.constant 1 : index
    %c1_26 = arith.constant 1 : index
    %c0_27 = arith.constant 0 : index
    %13 = vector.load %arg5[%c1_25, %c1_26, %c0_27] : memref<10x10x4xbf16, #tpu.memory_space<vmem>>, vector<8x8x4xbf16>
    tpu.vector_store %arg5[%c1_25, %c1_26, %c0_27], %10 {strides = array<i32>} : memref<10x10x4xbf16, #tpu.memory_space<vmem>>, vector<8x8x4xbf16>,
    %c0_28 = arith.constant 0 : index
    %c0_29 = arith.constant 0 : index
    %c0_30 = arith.constant 0 : index
    %14 = vector.load %arg5[%c0_28, %c0_29, %c0_30] : memref<10x10x4xbf16, #tpu.memory_space<vmem>>, vector<10x10x4xbf16>
    %15 = vector.extract_strided_slice %14 {offsets = [0, 0, 0], sizes = [8, 8, 4], strides = [1, 1, 1]} : vector<10x10x4xbf16> to vector<8x8x4xbf16>
    %c0_31 = arith.constant 0 : index
    %c0_32 = arith.constant 0 : index
    %c0_33 = arith.constant 0 : index
    %16 = vector.load %arg6[%c0_31, %c0_32, %c0_33] : memref<8x8x36xbf16, #tpu.memory_space<vmem>>, vector<8x8x4xbf16>
    tpu.vector_store %arg6[%c0_31, %c0_32, %c0_33], %15 {strides = array<i32>} : memref<8x8x36xbf16, #tpu.memory_space<vmem>>, vector<8x8x4xbf16>,
    %17 = vector.extract_strided_slice %14 {offsets = [0, 1, 0], sizes = [8, 8, 4], strides = [1, 1, 1]} : vector<10x10x4xbf16> to vector<8x8x4xbf16>
    %c0_34 = arith.constant 0 : index
    %c0_35 = arith.constant 0 : index
    %c4 = arith.constant 4 : index
    %18 = vector.load %arg6[%c0_34, %c0_35, %c4] : memref<8x8x36xbf16, #tpu.memory_space<vmem>>, vector<8x8x4xbf16>
    tpu.vector_store %arg6[%c0_34, %c0_35, %c4], %17 {strides = array<i32>} : memref<8x8x36xbf16, #tpu.memory_space<vmem>>, vector<8x8x4xbf16>,
    %19 = vector.extract_strided_slice %14 {offsets = [0, 2, 0], sizes = [8, 8, 4], strides = [1, 1, 1]} : vector<10x10x4xbf16> to vector<8x8x4xbf16>
    %c0_36 = arith.constant 0 : index
    %c0_37 = arith.constant 0 : index
    %c8 = arith.constant 8 : index
    %20 = vector.load %arg6[%c0_36, %c0_37, %c8] : memref<8x8x36xbf16, #tpu.memory_space<vmem>>, vector<8x8x4xbf16>
    tpu.vector_store %arg6[%c0_36, %c0_37, %c8], %19 {strides = array<i32>} : memref<8x8x36xbf16, #tpu.memory_space<vmem>>, vector<8x8x4xbf16>,
    %21 = vector.extract_strided_slice %14 {offsets = [1, 0, 0], sizes = [8, 8, 4], strides = [1, 1, 1]} : vector<10x10x4xbf16> to vector<8x8x4xbf16>
    %c0_38 = arith.constant 0 : index
    %c0_39 = arith.constant 0 : index
    %c12 = arith.constant 12 : index
    %22 = vector.load %arg6[%c0_38, %c0_39, %c12] : memref<8x8x36xbf16, #tpu.memory_space<vmem>>, vector<8x8x4xbf16>
    tpu.vector_store %arg6[%c0_38, %c0_39, %c12], %21 {strides = array<i32>} : memref<8x8x36xbf16, #tpu.memory_space<vmem>>, vector<8x8x4xbf16>,
    %23 = vector.extract_strided_slice %14 {offsets = [1, 1, 0], sizes = [8, 8, 4], strides = [1, 1, 1]} : vector<10x10x4xbf16> to vector<8x8x4xbf16>
    %c0_40 = arith.constant 0 : index
    %c0_41 = arith.constant 0 : index
    %c16 = arith.constant 16 : index
    %24 = vector.load %arg6[%c0_40, %c0_41, %c16] : memref<8x8x36xbf16, #tpu.memory_space<vmem>>, vector<8x8x4xbf16>
    tpu.vector_store %arg6[%c0_40, %c0_41, %c16], %23 {strides = array<i32>} : memref<8x8x36xbf16, #tpu.memory_space<vmem>>, vector<8x8x4xbf16>,
    %25 = vector.extract_strided_slice %14 {offsets = [1, 2, 0], sizes = [8, 8, 4], strides = [1, 1, 1]} : vector<10x10x4xbf16> to vector<8x8x4xbf16>
    %c0_42 = arith.constant 0 : index
    %c0_43 = arith.constant 0 : index
    %c20 = arith.constant 20 : index
    %26 = vector.load %arg6[%c0_42, %c0_43, %c20] : memref<8x8x36xbf16, #tpu.memory_space<vmem>>, vector<8x8x4xbf16>
    tpu.vector_store %arg6[%c0_42, %c0_43, %c20], %25 {strides = array<i32>} : memref<8x8x36xbf16, #tpu.memory_space<vmem>>, vector<8x8x4xbf16>,
    %27 = vector.extract_strided_slice %14 {offsets = [2, 0, 0], sizes = [8, 8, 4], strides = [1, 1, 1]} : vector<10x10x4xbf16> to vector<8x8x4xbf16>
    %c0_44 = arith.constant 0 : index
    %c0_45 = arith.constant 0 : index
    %c24 = arith.constant 24 : index
    %28 = vector.load %arg6[%c0_44, %c0_45, %c24] : memref<8x8x36xbf16, #tpu.memory_space<vmem>>, vector<8x8x4xbf16>
    tpu.vector_store %arg6[%c0_44, %c0_45, %c24], %27 {strides = array<i32>} : memref<8x8x36xbf16, #tpu.memory_space<vmem>>, vector<8x8x4xbf16>,
    %29 = vector.extract_strided_slice %14 {offsets = [2, 1, 0], sizes = [8, 8, 4], strides = [1, 1, 1]} : vector<10x10x4xbf16> to vector<8x8x4xbf16>
    %c0_46 = arith.constant 0 : index
    %c0_47 = arith.constant 0 : index
    %c28 = arith.constant 28 : index
    %30 = vector.load %arg6[%c0_46, %c0_47, %c28] : memref<8x8x36xbf16, #tpu.memory_space<vmem>>, vector<8x8x4xbf16>
    tpu.vector_store %arg6[%c0_46, %c0_47, %c28], %29 {strides = array<i32>} : memref<8x8x36xbf16, #tpu.memory_space<vmem>>, vector<8x8x4xbf16>,
    %31 = vector.extract_strided_slice %14 {offsets = [2, 2, 0], sizes = [8, 8, 4], strides = [1, 1, 1]} : vector<10x10x4xbf16> to vector<8x8x4xbf16>
    %c0_48 = arith.constant 0 : index
    %c0_49 = arith.constant 0 : index
    %c32 = arith.constant 32 : index
    %32 = vector.load %arg6[%c0_48, %c0_49, %c32] : memref<8x8x36xbf16, #tpu.memory_space<vmem>>, vector<8x8x4xbf16>
    tpu.vector_store %arg6[%c0_48, %c0_49, %c32], %31 {strides = array<i32>} : memref<8x8x36xbf16, #tpu.memory_space<vmem>>, vector<8x8x4xbf16>,
    %c0_50 = arith.constant 0 : index
    %c0_51 = arith.constant 0 : index
    %c0_52 = arith.constant 0 : index
    %33 = vector.load %arg6[%c0_50, %c0_51, %c0_52] : memref<8x8x36xbf16, #tpu.memory_space<vmem>>, vector<8x8x36xbf16>
    %34 = vector.shape_cast %33 : vector<8x8x36xbf16> to vector<64x36xbf16>
    %c0_53 = arith.constant 0 : index
    %c0_54 = arith.constant 0 : index
    %35 = vector.load %arg2[%c0_53, %c0_54] : memref<36x8xbf16, #tpu.memory_space<vmem>>, vector<36x8xbf16>
    %cst_55 = arith.constant dense<0.000000e+00> : vector<64x8xf32>
    %36 = tpu.matmul %34, %35, %cst_55 {dimension_numbers = #tpu.dot_dimension_numbers<[1], [0], [0], [1], [0, 0, 1, 1], [], []>} : vector<64x36xbf16>, vector<36x8xbf16>, vector<64x8xf32> -> vector<64x8xf32>
    %c0_56 = arith.constant 0 : index
    %c0_57 = arith.constant 0 : index
    %37 = vector.load %arg3[%c0_56, %c0_57] : memref<3x8xf32, #tpu.memory_space<vmem>>, vector<1x8xf32>
    %c1_58 = arith.constant 1 : index
    %c0_59 = arith.constant 0 : index
    %38 = vector.load %arg3[%c1_58, %c0_59] : memref<3x8xf32, #tpu.memory_space<vmem>>, vector<1x8xf32>
    %c2 = arith.constant 2 : index
    %c0_60 = arith.constant 0 : index
    %39 = vector.load %arg3[%c2, %c0_60] : memref<3x8xf32, #tpu.memory_space<vmem>>, vector<1x8xf32>
    %40 = vector.shape_cast %36 : vector<64x8xf32> to vector<1x64x8xf32>
    %cst_61 = arith.constant dense<0.000000e+00> : vector<1xf32>
    %41 = vector.multi_reduction <add>, %40, %cst_61 [1, 2] : vector<1x64x8xf32> to vector<1xf32>
    %42 = vector.shape_cast %41 : vector<1xf32> to vector<1x1x1xf32>
    %43 = vector.extract %42[0, 0, 0] : f32 from vector<1x1x1xf32>
    %44 = vector.shape_cast %37 : vector<1x8xf32> to vector<1x1x8xf32>
    %cst_62 = arith.constant dense<0.000000e+00> : vector<1xf32>
    %45 = vector.multi_reduction <add>, %44, %cst_62 [1, 2] : vector<1x1x8xf32> to vector<1xf32>
    %46 = vector.shape_cast %45 : vector<1xf32> to vector<1x1x1xf32>
    %47 = vector.extract %46[0, 0, 0] : f32 from vector<1x1x1xf32>
    %cst_63 = arith.constant 6.400000e+01 : f32
    %48 = arith.mulf %cst_63, %47 : f32
    %49 = arith.addf %43, %48 : f32
    %cst_64 = arith.constant 0.001953125 : f32
    %50 = arith.mulf %49, %cst_64 : f32
    %51 = vector.broadcast %50 : f32 to vector<1x8xf32>
    %52 = arith.subf %37, %51 : vector<1x8xf32>
    %53 = vector.broadcast %52 : vector<1x8xf32> to vector<64x8xf32>
    %54 = arith.addf %36, %53 : vector<64x8xf32>
    %55 = arith.mulf %54, %54 : vector<64x8xf32>
    %56 = vector.shape_cast %55 : vector<64x8xf32> to vector<1x64x8xf32>
    %cst_65 = arith.constant dense<0.000000e+00> : vector<1xf32>
    %57 = vector.multi_reduction <add>, %56, %cst_65 [1, 2] : vector<1x64x8xf32> to vector<1xf32>
    %58 = vector.shape_cast %57 : vector<1xf32> to vector<1x1x1xf32>
    %59 = vector.extract %58[0, 0, 0] : f32 from vector<1x1x1xf32>
    %cst_66 = arith.constant 0.001953125 : f32
    %60 = arith.mulf %59, %cst_66 : f32
    %cst_67 = arith.constant 9.99999974E-6 : f32
    %61 = arith.addf %60, %cst_67 : f32
    %62 = math.rsqrt %61 : f32
    %63 = vector.broadcast %62 : f32 to vector<1x8xf32>
    %64 = arith.mulf %38, %63 : vector<1x8xf32>
    %65 = vector.broadcast %64 : vector<1x8xf32> to vector<64x8xf32>
    %66 = arith.mulf %54, %65 : vector<64x8xf32>
    %67 = vector.broadcast %39 : vector<1x8xf32> to vector<64x8xf32>
    %68 = arith.addf %66, %67 : vector<64x8xf32>
    %cst_68 = arith.constant 0.000000e+00 : f32
    %69 = vector.broadcast %cst_68 : f32 to vector<64x8xf32>
    %70 = arith.maximumf %68, %69 : vector<64x8xf32>
    %c0_69 = arith.constant 0 : index
    %c0_70 = arith.constant 0 : index
    %c0_71 = arith.constant 0 : index
    %71 = vector.load %arg4[%c0_69, %c0_70, %c0_71] : memref<1x64x8xf32, #tpu.memory_space<vmem>>, vector<1x64x8xf32>
    %72 = vector.shape_cast %71 : vector<1x64x8xf32> to vector<64x8xf32>
    %73 = vector.shape_cast %70 : vector<64x8xf32> to vector<1x64x8xf32>
    tpu.vector_store %arg4[%c0_69, %c0_70, %c0_71], %73 {strides = array<i32>} : memref<1x64x8xf32, #tpu.memory_space<vmem>>, vector<1x64x8xf32>,
    return
  }
  func.func @transform_0(%arg0: i32) -> (i32, i32, i32, i32, i32, i32) {
    %c0_i32 = arith.constant 0 : i32
    %c0_i32_0 = arith.constant 0 : i32
    %c0_i32_1 = arith.constant 0 : i32
    %c0_i32_2 = arith.constant 0 : i32
    %c0_i32_3 = arith.constant 0 : i32
    %c0_i32_4 = arith.constant 0 : i32
    return %arg0, %c0_i32, %c0_i32_0, %c0_i32_1, %c0_i32_2, %c0_i32_3 : i32, i32, i32, i32, i32, i32
  }
  func.func @transform_1(%arg0: i32) -> (i32, i32) {
    %c0_i32 = arith.constant 0 : i32
    %c0_i32_0 = arith.constant 0 : i32
    %c0_i32_1 = arith.constant 0 : i32
    return %c0_i32, %c0_i32_0 : i32, i32
  }
  func.func @transform_2(%arg0: i32) -> (i32, i32) {
    %c0_i32 = arith.constant 0 : i32
    %c0_i32_0 = arith.constant 0 : i32
    %c0_i32_1 = arith.constant 0 : i32
    return %c0_i32, %c0_i32_0 : i32, i32
  }
  func.func @transform_3(%arg0: i32) -> (i32, i32, i32) {
    %c0_i32 = arith.constant 0 : i32
    %c0_i32_0 = arith.constant 0 : i32
    %c0_i32_1 = arith.constant 0 : i32
    return %arg0, %c0_i32, %c0_i32_0 : i32, i32, i32
  }
}

</mosaic_0001>

<llo_original>
// kernel: tpu_custom_call.1
$region0: #{tpu_custom_call.1}
  #allocation0 [shape = 'u32[]', space=smem, size = 0x4, offset = 0x4, fixed_abs, tag = 'smem constant byte address 0x4 - core index']
  #allocation1 [shape = 'u32[144,128]{1,0:T(1,128)}', space=vmem, size = 0x12000, scoped, tag = 'internal scratch']
  #allocation2 [shape = 'bf16[10,10,4]{2,1,0:T(8,128)(2,1)}', space=vmem, size = 0xa000, scoped, tag = 'scratch operand']
  #allocation3 [shape = 'bf16[8,8,36]{2,1,0:T(8,128)(2,1)}', space=vmem, size = 0x4000, scoped, tag = 'scratch operand']
  %s0 = inlined_call_operand.vmem [shape: bf16[2,2,2,8,8,4], index: 0, kind: input, shape index: {}]
  %s1 = inlined_call_operand.vmem [shape: bf16[36,8], index: 1, kind: input, shape index: {}]
  %s2 = inlined_call_operand.vmem [shape: f32[3,8], index: 2, kind: input, shape index: {}]
  %s3 = inlined_call_operand.vmem [shape: f32[2,64,8], index: 3, kind: output, shape index: {}]
  %s4 = sld [smem:[#allocation0]]
  $region45: #{tpu_custom_call.1} parent=0
    _
  %s6 = ssub.s32 1, %s4
  %s7 = scalar_select 0, %s6, %s4
  loop: start=0, step=1, limit=4
  $region2: #{tpu_custom_call.1} parent=0 // loop_pre_header
    _
  $region3: #{tpu_custom_call.1} parent=0 // loop_header
    %s9 = sphi 0, %s13
    %p10 = scmp.ge.s32.totalorder %s9, 4
    %s19 = sphi 0, %s21
    %s22 = sphi 0, %s19
    %s23 = sphi 0, %s22
    %s39 = sphi 0, %s23
    %s43 = sphi 0, %s43
    %s45 = sphi 0, %s43
    %s46 = sphi 0, %s45
    %s60 = sphi 0, %s46
    %s64 = sphi 0, %s64
    %s66 = sphi 0, %s64
    %s67 = sphi 0, %s66
    %s81 = sphi 0, %s67
    %s87 = sphi 0, %s89
    %s90 = sphi 0, %s87
    %s91 = sphi 0, %s90
    %s107 = sphi 0, %s91
  $region4: #{tpu_custom_call.1} parent=0 // loop_header_branch
    %12 = sbr.rel (%p10) target = $region8
  $region5: #{tpu_custom_call.1} parent=0 // loop_body
    %s14 = ssub.s32 %s9, 1
    %s15 = ssub.s32 %s9, 2
    %s16 = sadd.s32 %s9, 1
    %s17 = ssub.s32 %s9, %s16
    %p18 = scmp.eq.s32.totalorder %s17, 0
    %s20 = sadd.s32 %s19, 1
    %s21 = scalar_select %p18, %s19, %s20
    %p24 = pneg %p18
    %p25 = scmp.eq.s32.totalorder %s9, 1
    %p26 = por %p24, %p25
    %p27 = scmp.ne.s32.totalorder %s19, %s22
    %p28 = scmp.eq.s32.totalorder %s9, 0
    %p29 = por %p27, %p28
    %p30 = scmp.ne.s32.totalorder %s19, %s22
    %p31 = scmp.eq.s32.totalorder %s14, 1
    %p32 = por %p30, %p31
    %p33 = scmp.ne.s32.totalorder %s22, %s23
    %p34 = scmp.eq.s32.totalorder %s14, 0
    %p35 = por %p33, %p34
    %p36 = scmp.ne.s32.totalorder %s22, %s23
    %p37 = scmp.eq.s32.totalorder %s15, 1
    %p38 = por %p36, %p37
    %p40 = scmp.ne.s32.totalorder %s23, %s39
    %p41 = scmp.eq.s32.totalorder %s15, 0
    %p42 = por %p40, %p41
    %s44 = sadd.s32 %s43, 1
    %p47 = scmp.eq.s32.totalorder %s9, 1
    %p48 = scmp.ne.s32.totalorder %s43, %s45
    %p49 = scmp.eq.s32.totalorder %s9, 0
    %p50 = por %p48, %p49
    %p51 = scmp.ne.s32.totalorder %s43, %s45
    %p52 = scmp.eq.s32.totalorder %s14, 1
    %p53 = por %p51, %p52
    %p54 = scmp.ne.s32.totalorder %s45, %s46
    %p55 = scmp.eq.s32.totalorder %s14, 0
    %p56 = por %p54, %p55
    %p57 = scmp.ne.s32.totalorder %s45, %s46
    %p58 = scmp.eq.s32.totalorder %s15, 1
    %p59 = por %p57, %p58
    %p61 = scmp.ne.s32.totalorder %s46, %s60
    %p62 = scmp.eq.s32.totalorder %s15, 0
    %p63 = por %p61, %p62
    %s65 = sadd.s32 %s64, 1
    %p68 = scmp.eq.s32.totalorder %s9, 1
    %p69 = scmp.ne.s32.totalorder %s64, %s66
    %p70 = scmp.eq.s32.totalorder %s9, 0
    %p71 = por %p69, %p70
    %p72 = scmp.ne.s32.totalorder %s64, %s66
    %p73 = scmp.eq.s32.totalorder %s14, 1
    %p74 = por %p72, %p73
    %p75 = scmp.ne.s32.totalorder %s66, %s67
    %p76 = scmp.eq.s32.totalorder %s14, 0
    %p77 = por %p75, %p76
    %p78 = scmp.ne.s32.totalorder %s66, %s67
    %p79 = scmp.eq.s32.totalorder %s15, 1
    %p80 = por %p78, %p79
    %p82 = scmp.ne.s32.totalorder %s67, %s81
    %p83 = scmp.eq.s32.totalorder %s15, 0
    %p84 = por %p82, %p83
    %s85 = ssub.s32 %s9, %s16
    %p86 = scmp.eq.s32.totalorder %s85, 0
    %s88 = sadd.s32 %s87, 1
    %s89 = scalar_select %p86, %s87, %s88
    %p92 = pneg %p86
    %p93 = scmp.eq.s32.totalorder %s9, 1
    %p94 = por %p92, %p93
    %p95 = scmp.ne.s32.totalorder %s87, %s90
    %p96 = scmp.eq.s32.totalorder %s9, 0
    %p97 = por %p95, %p96
    %p98 = scmp.ne.s32.totalorder %s87, %s90
    %p99 = scmp.eq.s32.totalorder %s14, 1
    %p100 = por %p98, %p99
    %p101 = scmp.ne.s32.totalorder %s90, %s91
    %p102 = scmp.eq.s32.totalorder %s14, 0
    %p103 = por %p101, %p102
    %p104 = scmp.ne.s32.totalorder %s90, %s91
    %p105 = scmp.eq.s32.totalorder %s15, 1
    %p106 = por %p104, %p105
    %p108 = scmp.ne.s32.totalorder %s91, %s107
    %p109 = scmp.eq.s32.totalorder %s15, 0
    %p110 = por %p108, %p109
    %p111 = scmp.le.s32.totalorder 1, %s9
    %p112 = scmp.lt.s32.totalorder %s9, 3
    %p113 = pnand %p111, %p112
    %p114 = pneg %p113
    // Predicated region
    $region9: #{tpu_custom_call.1} parent=5 // pred_check
      _
    $region10: #{tpu_custom_call.1} parent=5 // pred_check_branch
      %116 = sbr.rel (%p113) target = $region12
    $region11: #{tpu_custom_call.1} parent=5 // pred_region
      %s117 = ssub.s32 %s9, 1
      // Predicated region
      $region13: #{tpu_custom_call.1} parent=11 // pred_check
        %p118 = pneg %p56
      $region14: #{tpu_custom_call.1} parent=11 // pred_check_branch
        %120 = sbr.rel (%p118) target = $region16
      $region15: #{tpu_custom_call.1} parent=11 // pred_region
        _
      $region16: #{tpu_custom_call.1} parent=11 // pred_fallthru
        _
      // Predicated region
      $region17: #{tpu_custom_call.1} parent=11 // pred_check
        %p121 = pneg %p77
      $region18: #{tpu_custom_call.1} parent=11 // pred_check_branch
        %123 = sbr.rel (%p121) target = $region20
      $region19: #{tpu_custom_call.1} parent=11 // pred_region
        _
      $region20: #{tpu_custom_call.1} parent=11 // pred_fallthru
        _
    $region12: #{tpu_custom_call.1} parent=5 // pred_fallthru
      _
    %p124 = scmp.lt.s32.totalorder %s9, 2
    // Predicated region
    $region21: #{tpu_custom_call.1} parent=5 // pred_check
      %p125 = pneg %p124
    $region22: #{tpu_custom_call.1} parent=5 // pred_check_branch
      %127 = sbr.rel (%p125) target = $region24
    $region23: #{tpu_custom_call.1} parent=5 // pred_region
      // Predicated region
      $region25: #{tpu_custom_call.1} parent=23 // pred_check
        %p128 = pneg %p29
      $region26: #{tpu_custom_call.1} parent=23 // pred_check_branch
        %130 = sbr.rel (%p128) target = $region28
      $region27: #{tpu_custom_call.1} parent=23 // pred_region
        %p131 = scmp.lt.s32.totalorder %s9, 1
        %s132 = scalar_select %p131, %s9, 1
        %s133 = smul.addr %s132, 32
        %s134 = smul.addr %s133, 4
        %s135 = scalar_lea.vmem %s0, %s134
      $region28: #{tpu_custom_call.1} parent=23 // pred_fallthru
        _
    $region24: #{tpu_custom_call.1} parent=5 // pred_fallthru
      _
    %p136 = scmp.le.s32.totalorder 1, %s9
    %p137 = scmp.lt.s32.totalorder %s9, 3
    %p138 = pnand %p136, %p137
    %p139 = pneg %p138
    // Predicated region
    $region29: #{tpu_custom_call.1} parent=5 // pred_check
      _
    $region30: #{tpu_custom_call.1} parent=5 // pred_check_branch
      %141 = sbr.rel (%p138) target = $region32
    $region31: #{tpu_custom_call.1} parent=5 // pred_region
      %s142 = ssub.s32 %s9, 1
      %p143 = scmp.lt.s32.totalorder %s14, 1
      %s144 = scalar_select %p143, %s14, 1
      %s145 = smul.addr %s144, 32
      %s146 = smul.addr %s145, 4
      %s147 = scalar_lea.vmem %s0, %s146
      %p148 = pneg %p35
      %p149 = pneg %p32
      %p150 = pneg %p56
      %p151 = pneg %p53
      %p152 = pneg %p77
      %p153 = pneg %p74
      %p154 = pneg %p103
      %p155 = pneg %p100
      %p156 = scmp.lt.s32.totalorder %s14, 1
      %s157 = scalar_select %p156, %s14, 1
      %s158 = smul.addr %s157, 8
      %s159 = smul.addr %s158, 8
      %s160 = scalar_lea.vmem %s3, %s159
      %p161 = scmp.lt.s32.totalorder %s14, 1
      %s162 = scalar_select %p161, %s14, 1
      %s163 = smul.addr %s162, 32
      %s164 = smul.addr %s163, 4
      %s165 = scalar_lea.vmem %s0, %s164
      %p166 = scmp.lt.s32.totalorder %s14, 1
      %s167 = scalar_select %p166, %s14, 1
      %s168 = smul.addr %s167, 8
      %s169 = smul.addr %s168, 8
      %s170 = scalar_lea.vmem %s3, %s169
      %v172 = vld [vmem:[%s165] sm:$0xf]
      %v173 = vld [vmem:[%s165 + $0x4] sm:$0xf]
      %v174 = vld [vmem:[%s165 + $0x8] sm:$0xf]
      %v175 = vld [vmem:[%s165 + $0xc] sm:$0xf]
      %v176 = vld [vmem:[%s165 + $0x10] sm:$0xf]
      %v177 = vld [vmem:[%s165 + $0x14] sm:$0xf]
      %v178 = vld [vmem:[%s165 + $0x18] sm:$0xf]
      %v179 = vld [vmem:[%s165 + $0x1c] sm:$0xf]
      %s180 = scalar_lea.vmem %s165, 32
      %v181 = vld [vmem:[%s180] sm:$0xf]
      %v182 = vld [vmem:[%s180 + $0x4] sm:$0xf]
      %v183 = vld [vmem:[%s180 + $0x8] sm:$0xf]
      %v184 = vld [vmem:[%s180 + $0xc] sm:$0xf]
      %v185 = vld [vmem:[%s180 + $0x10] sm:$0xf]
      %v186 = vld [vmem:[%s180 + $0x14] sm:$0xf]
      %v187 = vld [vmem:[%s180 + $0x18] sm:$0xf]
      %v188 = vld [vmem:[%s180 + $0x1c] sm:$0xf]
      %v189 = vmax.bf16 %v172, %v181
      %v190 = vmax.bf16 %v173, %v182
      %v191 = vmax.bf16 %v174, %v183
      %v192 = vmax.bf16 %v175, %v184
      %v193 = vmax.bf16 %v176, %v185
      %v194 = vmax.bf16 %v177, %v186
      %v195 = vmax.bf16 %v178, %v187
      %v196 = vmax.bf16 %v179, %v188
      %s197 = scalar_lea.vmem %s165, 64
      %v198 = vld [vmem:[%s197] sm:$0xf]
      %v199 = vld [vmem:[%s197 + $0x4] sm:$0xf]
      %v200 = vld [vmem:[%s197 + $0x8] sm:$0xf]
      %v201 = vld [vmem:[%s197 + $0xc] sm:$0xf]
      %v202 = vld [vmem:[%s197 + $0x10] sm:$0xf]
      %v203 = vld [vmem:[%s197 + $0x14] sm:$0xf]
      %v204 = vld [vmem:[%s197 + $0x18] sm:$0xf]
      %v205 = vld [vmem:[%s197 + $0x1c] sm:$0xf]
      %s206 = scalar_lea.vmem %s165, 96
      %v207 = vld [vmem:[%s206] sm:$0xf]
      %v208 = vld [vmem:[%s206 + $0x4] sm:$0xf]
      %v209 = vld [vmem:[%s206 + $0x8] sm:$0xf]
      %v210 = vld [vmem:[%s206 + $0xc] sm:$0xf]
      %v211 = vld [vmem:[%s206 + $0x10] sm:$0xf]
      %v212 = vld [vmem:[%s206 + $0x14] sm:$0xf]
      %v213 = vld [vmem:[%s206 + $0x18] sm:$0xf]
      %v214 = vld [vmem:[%s206 + $0x1c] sm:$0xf]
      %v215 = vmax.bf16 %v198, %v207
      %v216 = vmax.bf16 %v199, %v208
      %v217 = vmax.bf16 %v200, %v209
      %v218 = vmax.bf16 %v201, %v210
      %v219 = vmax.bf16 %v202, %v211
      %v220 = vmax.bf16 %v203, %v212
      %v221 = vmax.bf16 %v204, %v213
      %v222 = vmax.bf16 %v205, %v214
      %v223 = vmax.bf16 %v189, %v215
      %v224 = vmax.bf16 %v190, %v216
      %v225 = vmax.bf16 %v191, %v217
      %v226 = vmax.bf16 %v192, %v218
      %v227 = vmax.bf16 %v193, %v219
      %v228 = vmax.bf16 %v194, %v220
      %v229 = vmax.bf16 %v195, %v221
      %v230 = vmax.bf16 %v196, %v222
      %vm231 = vcmask 27648
      %232 = vst.msk [vmem:[#allocation2] sm:$0xf] %vm231, 0
      %vm233 = vcmask 24576
      %234 = vst.msk [vmem:[#allocation2 + $0x4] sm:$0x1] %vm233, 0
      %235 = vst.msk [vmem:[#allocation2 + $0x8] sm:$0xf] %vm231, 0
      %236 = vst.msk [vmem:[#allocation2 + $0xc] sm:$0x1] %vm233, 0
      %237 = vst.msk [vmem:[#allocation2 + $0x10] sm:$0xf] %vm231, 0
      %238 = vst.msk [vmem:[#allocation2 + $0x14] sm:$0x1] %vm233, 0
      %239 = vst.msk [vmem:[#allocation2 + $0x18] sm:$0xf] %vm231, 0
      %240 = vst.msk [vmem:[#allocation2 + $0x1c] sm:$0x1] %vm233, 0
      %241 = vst.msk [vmem:[#allocation2 + $0x20] sm:$0xf] %vm231, 0
      %242 = vst.msk [vmem:[#allocation2 + $0x24] sm:$0x1] %vm233, 0
      %243 = vst.msk [vmem:[#allocation2 + $0x28] sm:$0xf] %vm231, 0
      %244 = vst.msk [vmem:[#allocation2 + $0x2c] sm:$0x1] %vm233, 0
      %245 = vst.msk [vmem:[#allocation2 + $0x30] sm:$0xf] %vm231, 0
      %246 = vst.msk [vmem:[#allocation2 + $0x34] sm:$0x1] %vm233, 0
      %247 = vst.msk [vmem:[#allocation2 + $0x38] sm:$0xf] %vm231, 0
      %248 = vst.msk [vmem:[#allocation2 + $0x3c] sm:$0x1] %vm233, 0
      %249 = vst.msk [vmem:[#allocation2 + $0x40] sm:$0xf] %vm231, 0
      %250 = vst.msk [vmem:[#allocation2 + $0x44] sm:$0x1] %vm233, 0
      %251 = vst.msk [vmem:[#allocation2 + $0x48] sm:$0xf] %vm231, 0
      %252 = vst.msk [vmem:[#allocation2 + $0x4c] sm:$0x1] %vm233, 0
      %v254 = vshrl.u32 %v223, 16
      %v256 = vrot.slane %v254, 7
      %v257 = vshll.u32 %v223, 16
      %v259 = vor.u32 %v256, %v257
      %v260 = vrot.slane %v256, 4
      %v262 = vshrl.u32 %v224, 16
      %v264 = vrot.slane %v262, 7
      %v265 = vshll.u32 %v224, 16
      %v267 = vor.u32 %v264, %v265
      %v268 = vrot.slane %v264, 4
      %v270 = vshrl.u32 %v225, 16
      %v272 = vrot.slane %v270, 7
      %v273 = vshll.u32 %v225, 16
      %v275 = vor.u32 %v272, %v273
      %v276 = vrot.slane %v272, 4
      %v278 = vshrl.u32 %v226, 16
      %v280 = vrot.slane %v278, 7
      %v281 = vshll.u32 %v226, 16
      %v283 = vor.u32 %v280, %v281
      %v284 = vrot.slane %v280, 4
      %v286 = vshrl.u32 %v227, 16
      %v288 = vrot.slane %v286, 7
      %v289 = vshll.u32 %v227, 16
      %v291 = vor.u32 %v288, %v289
      %v292 = vrot.slane %v288, 4
      %v294 = vshrl.u32 %v228, 16
      %v296 = vrot.slane %v294, 7
      %v297 = vshll.u32 %v228, 16
      %v299 = vor.u32 %v296, %v297
      %v300 = vrot.slane %v296, 4
      %v302 = vshrl.u32 %v229, 16
      %v304 = vrot.slane %v302, 7
      %v305 = vshll.u32 %v229, 16
      %v307 = vor.u32 %v304, %v305
      %v308 = vrot.slane %v304, 4
      %v310 = vshrl.u32 %v230, 16
      %v312 = vrot.slane %v310, 7
      %v313 = vshll.u32 %v230, 16
      %v315 = vor.u32 %v312, %v313
      %v316 = vrot.slane %v312, 4
      %s333 = scalar_lea.vmem [#allocation2], 8
      %vm334 = vcmask 27648
      %vm335 = vsmask.f32 7938
      %vm336 = vmand %vm334, %vm335
      %v337 = vld [vmem:[%s333] sm:$0xf]
      %v338 = vsel %vm336, %v259, %v337
      %339 = vst [vmem:[%s333] sm:$0xf] %v338
      %vm340 = vcmask 24576
      %vm341 = vsmask.f32 256
      %vm342 = vmand %vm340, %vm341
      %v343 = vld [vmem:[%s333 + $0x4] sm:$0x1]
      %v344 = vsel %vm342, %v260, %v343
      %345 = vst [vmem:[%s333 + $0x4] sm:$0x1] %v344
      %v346 = vld [vmem:[%s333 + $0x8] sm:$0xf]
      %v347 = vsel %vm336, %v267, %v346
      %348 = vst [vmem:[%s333 + $0x8] sm:$0xf] %v347
      %v349 = vld [vmem:[%s333 + $0xc] sm:$0x1]
      %v350 = vsel %vm342, %v268, %v349
      %351 = vst [vmem:[%s333 + $0xc] sm:$0x1] %v350
      %v352 = vld [vmem:[%s333 + $0x10] sm:$0xf]
      %v353 = vsel %vm336, %v275, %v352
      %354 = vst [vmem:[%s333 + $0x10] sm:$0xf] %v353
      %v355 = vld [vmem:[%s333 + $0x14] sm:$0x1]
      %v356 = vsel %vm342, %v276, %v355
      %357 = vst [vmem:[%s333 + $0x14] sm:$0x1] %v356
      %v358 = vld [vmem:[%s333 + $0x18] sm:$0xf]
      %v359 = vsel %vm336, %v283, %v358
      %360 = vst [vmem:[%s333 + $0x18] sm:$0xf] %v359
      %v361 = vld [vmem:[%s333 + $0x1c] sm:$0x1]
      %v362 = vsel %vm342, %v284, %v361
      %363 = vst [vmem:[%s333 + $0x1c] sm:$0x1] %v362
      %v364 = vld [vmem:[%s333 + $0x20] sm:$0xf]
      %v365 = vsel %vm336, %v291, %v364
      %366 = vst [vmem:[%s333 + $0x20] sm:$0xf] %v365
      %v367 = vld [vmem:[%s333 + $0x24] sm:$0x1]
      %v368 = vsel %vm342, %v292, %v367
      %369 = vst [vmem:[%s333 + $0x24] sm:$0x1] %v368
      %v370 = vld [vmem:[%s333 + $0x28] sm:$0xf]
      %v371 = vsel %vm336, %v299, %v370
      %372 = vst [vmem:[%s333 + $0x28] sm:$0xf] %v371
      %v373 = vld [vmem:[%s333 + $0x2c] sm:$0x1]
      %v374 = vsel %vm342, %v300, %v373
      %375 = vst [vmem:[%s333 + $0x2c] sm:$0x1] %v374
      %v376 = vld [vmem:[%s333 + $0x30] sm:$0xf]
      %v377 = vsel %vm336, %v307, %v376
      %378 = vst [vmem:[%s333 + $0x30] sm:$0xf] %v377
      %v379 = vld [vmem:[%s333 + $0x34] sm:$0x1]
      %v380 = vsel %vm342, %v308, %v379
      %381 = vst [vmem:[%s333 + $0x34] sm:$0x1] %v380
      %v382 = vld [vmem:[%s333 + $0x38] sm:$0xf]
      %v383 = vsel %vm336, %v315, %v382
      %384 = vst [vmem:[%s333 + $0x38] sm:$0xf] %v383
      %v385 = vld [vmem:[%s333 + $0x3c] sm:$0x1]
      %v386 = vsel %vm342, %v316, %v385
      %387 = vst [vmem:[%s333 + $0x3c] sm:$0x1] %v386
      %v388 = vld [vmem:[#allocation2] sm:$0xf]
      %v389 = vld [vmem:[#allocation2 + $0x4] sm:$0x1]
      %v390 = vld [vmem:[#allocation2 + $0x8] sm:$0xf]
      %v391 = vld [vmem:[#allocation2 + $0xc] sm:$0x1]
      %v392 = vld [vmem:[#allocation2 + $0x10] sm:$0xf]
      %v393 = vld [vmem:[#allocation2 + $0x14] sm:$0x1]
      %v394 = vld [vmem:[#allocation2 + $0x18] sm:$0xf]
      %v395 = vld [vmem:[#allocation2 + $0x1c] sm:$0x1]
      %v396 = vld [vmem:[#allocation2 + $0x20] sm:$0xf]
      %v397 = vld [vmem:[#allocation2 + $0x24] sm:$0x1]
      %v398 = vld [vmem:[#allocation2 + $0x28] sm:$0xf]
      %v399 = vld [vmem:[#allocation2 + $0x2c] sm:$0x1]
      %v400 = vld [vmem:[#allocation2 + $0x30] sm:$0xf]
      %v401 = vld [vmem:[#allocation2 + $0x34] sm:$0x1]
      %v402 = vld [vmem:[#allocation2 + $0x38] sm:$0xf]
      %v403 = vld [vmem:[#allocation2 + $0x3c] sm:$0x1]
      %v404 = vld [vmem:[#allocation2 + $0x40] sm:$0xf]
      %v405 = vld [vmem:[#allocation2 + $0x44] sm:$0x1]
      %v406 = vld [vmem:[#allocation2 + $0x48] sm:$0xf]
      %v407 = vld [vmem:[#allocation2 + $0x4c] sm:$0x1]
      %408 = vst.msk [vmem:[#allocation3] sm:$0xf] %vm231, %v388
      %409 = vst.msk [vmem:[#allocation3 + $0x4] sm:$0xf] %vm231, %v390
      %410 = vst.msk [vmem:[#allocation3 + $0x8] sm:$0xf] %vm231, %v392
      %411 = vst.msk [vmem:[#allocation3 + $0xc] sm:$0xf] %vm231, %v394
      %412 = vst.msk [vmem:[#allocation3 + $0x10] sm:$0xf] %vm231, %v396
      %413 = vst.msk [vmem:[#allocation3 + $0x14] sm:$0xf] %vm231, %v398
      %414 = vst.msk [vmem:[#allocation3 + $0x18] sm:$0xf] %vm231, %v400
      %415 = vst.msk [vmem:[#allocation3 + $0x1c] sm:$0xf] %vm231, %v402
      %vm416 = vsmask.f32 3328
      %vm417 = vsmask.f32 7440
      %vm418 = vmor %vm416, %vm417
      %v420 = vshrl.u32 %v388, 16
      %v422 = vrot.slane %v420, 4
      %v423 = vshll.u32 %v388, 16
      %v425 = vrot.slane %v423, 5
      %v426 = vor.u32 %v422, %v425
      %v427 = vrot.slane %v426, 4
      %v429 = vshll.u32 %v389, 16
      %v431 = vrot.slane %v429, 5
      %v432 = vsel %vm418, %v427, %v431
      %v434 = vshrl.u32 %v390, 16
      %v436 = vrot.slane %v434, 4
      %v437 = vshll.u32 %v390, 16
      %v439 = vrot.slane %v437, 5
      %v440 = vor.u32 %v436, %v439
      %v441 = vrot.slane %v440, 4
      %v443 = vshll.u32 %v391, 16
      %v445 = vrot.slane %v443, 5
      %v446 = vsel %vm418, %v441, %v445
      %v448 = vshrl.u32 %v392, 16
      %v450 = vrot.slane %v448, 4
      %v451 = vshll.u32 %v392, 16
      %v453 = vrot.slane %v451, 5
      %v454 = vor.u32 %v450, %v453
      %v455 = vrot.slane %v454, 4
      %v457 = vshll.u32 %v393, 16
      %v459 = vrot.slane %v457, 5
      %v460 = vsel %vm418, %v455, %v459
      %v462 = vshrl.u32 %v394, 16
      %v464 = vrot.slane %v462, 4
      %v465 = vshll.u32 %v394, 16
      %v467 = vrot.slane %v465, 5
      %v468 = vor.u32 %v464, %v467
      %v469 = vrot.slane %v468, 4
      %v471 = vshll.u32 %v395, 16
      %v473 = vrot.slane %v471, 5
      %v474 = vsel %vm418, %v469, %v473
      %v476 = vshrl.u32 %v396, 16
      %v478 = vrot.slane %v476, 4
      %v479 = vshll.u32 %v396, 16
      %v481 = vrot.slane %v479, 5
      %v482 = vor.u32 %v478, %v481
      %v483 = vrot.slane %v482, 4
      %v485 = vshll.u32 %v397, 16
      %v487 = vrot.slane %v485, 5
      %v488 = vsel %vm418, %v483, %v487
      %v490 = vshrl.u32 %v398, 16
      %v492 = vrot.slane %v490, 4
      %v493 = vshll.u32 %v398, 16
      %v495 = vrot.slane %v493, 5
      %v496 = vor.u32 %v492, %v495
      %v497 = vrot.slane %v496, 4
      %v499 = vshll.u32 %v399, 16
      %v501 = vrot.slane %v499, 5
      %v502 = vsel %vm418, %v497, %v501
      %v504 = vshrl.u32 %v400, 16
      %v506 = vrot.slane %v504, 4
      %v507 = vshll.u32 %v400, 16
      %v509 = vrot.slane %v507, 5
      %v510 = vor.u32 %v506, %v509
      %v511 = vrot.slane %v510, 4
      %v513 = vshll.u32 %v401, 16
      %v515 = vrot.slane %v513, 5
      %v516 = vsel %vm418, %v511, %v515
      %v518 = vshrl.u32 %v402, 16
      %v520 = vrot.slane %v518, 4
      %v521 = vshll.u32 %v402, 16
      %v523 = vrot.slane %v521, 5
      %v524 = vor.u32 %v520, %v523
      %v525 = vrot.slane %v524, 4
      %v527 = vshll.u32 %v403, 16
      %v529 = vrot.slane %v527, 5
      %v530 = vsel %vm418, %v525, %v529
      %531 = vrot.lane.b32.xlu0 %v432, 4
      %v532 = vpop.permute.xlu0 %531
      %533 = vrot.lane.b32.xlu0 %v446, 4
      %v534 = vpop.permute.xlu0 %533
      %535 = vrot.lane.b32.xlu0 %v460, 4
      %v536 = vpop.permute.xlu0 %535
      %537 = vrot.lane.b32.xlu0 %v474, 4
      %v538 = vpop.permute.xlu0 %537
      %539 = vrot.lane.b32.xlu0 %v488, 4
      %v540 = vpop.permute.xlu0 %539
      %541 = vrot.lane.b32.xlu0 %v502, 4
      %v542 = vpop.permute.xlu0 %541
      %543 = vrot.lane.b32.xlu0 %v516, 4
      %v544 = vpop.permute.xlu0 %543
      %545 = vrot.lane.b32.xlu0 %v530, 4
      %v546 = vpop.permute.xlu0 %545
      %vm555 = vcmask 60448
      %556 = vst.msk [vmem:[#allocation3] sm:$0xf] %vm555, %v532
      %557 = vst.msk [vmem:[#allocation3 + $0x4] sm:$0xf] %vm555, %v534
      %558 = vst.msk [vmem:[#allocation3 + $0x8] sm:$0xf] %vm555, %v536
      %559 = vst.msk [vmem:[#allocation3 + $0xc] sm:$0xf] %vm555, %v538
      %560 = vst.msk [vmem:[#allocation3 + $0x10] sm:$0xf] %vm555, %v540
      %561 = vst.msk [vmem:[#allocation3 + $0x14] sm:$0xf] %vm555, %v542
      %562 = vst.msk [vmem:[#allocation3 + $0x18] sm:$0xf] %vm555, %v544
      %563 = vst.msk [vmem:[#allocation3 + $0x1c] sm:$0xf] %vm555, %v546
      %vm580 = vcmask 1042432
      %vm581 = vcmask 1046532
      %vm582 = vmor %vm580, %vm581
      %v583 = vrot.slane %v388, 5
      %v584 = vrot.slane %v583, 4
      %v585 = vrot.slane %v389, 5
      %v586 = vsel %vm582, %v584, %v585
      %v587 = vrot.slane %v390, 5
      %v588 = vrot.slane %v587, 4
      %v589 = vrot.slane %v391, 5
      %v590 = vsel %vm582, %v588, %v589
      %v591 = vrot.slane %v392, 5
      %v592 = vrot.slane %v591, 4
      %v593 = vrot.slane %v393, 5
      %v594 = vsel %vm582, %v592, %v593
      %v595 = vrot.slane %v394, 5
      %v596 = vrot.slane %v595, 4
      %v597 = vrot.slane %v395, 5
      %v598 = vsel %vm582, %v596, %v597
      %v599 = vrot.slane %v396, 5
      %v600 = vrot.slane %v599, 4
      %v601 = vrot.slane %v397, 5
      %v602 = vsel %vm582, %v600, %v601
      %v603 = vrot.slane %v398, 5
      %v604 = vrot.slane %v603, 4
      %v605 = vrot.slane %v399, 5
      %v606 = vsel %vm582, %v604, %v605
      %v607 = vrot.slane %v400, 5
      %v608 = vrot.slane %v607, 4
      %v609 = vrot.slane %v401, 5
      %v610 = vsel %vm582, %v608, %v609
      %v611 = vrot.slane %v402, 5
      %v612 = vrot.slane %v611, 4
      %v613 = vrot.slane %v403, 5
      %v614 = vsel %vm582, %v612, %v613
      %615 = vrot.lane.b32.xlu0 %v586, 8
      %v616 = vpop.permute.xlu0 %615
      %617 = vrot.lane.b32.xlu0 %v590, 8
      %v618 = vpop.permute.xlu0 %617
      %619 = vrot.lane.b32.xlu0 %v594, 8
      %v620 = vpop.permute.xlu0 %619
      %621 = vrot.lane.b32.xlu0 %v598, 8
      %v622 = vpop.permute.xlu0 %621
      %623 = vrot.lane.b32.xlu0 %v602, 8
      %v624 = vpop.permute.xlu0 %623
      %625 = vrot.lane.b32.xlu0 %v606, 8
      %v626 = vpop.permute.xlu0 %625
      %627 = vrot.lane.b32.xlu0 %v610, 8
      %v628 = vpop.permute.xlu0 %627
      %629 = vrot.lane.b32.xlu0 %v614, 8
      %v630 = vpop.permute.xlu0 %629
      %vm639 = vcmask 93248
      %640 = vst.msk [vmem:[#allocation3] sm:$0xf] %vm639, %v616
      %641 = vst.msk [vmem:[#allocation3 + $0x4] sm:$0xf] %vm639, %v618
      %642 = vst.msk [vmem:[#allocation3 + $0x8] sm:$0xf] %vm639, %v620
      %643 = vst.msk [vmem:[#allocation3 + $0xc] sm:$0xf] %vm639, %v622
      %644 = vst.msk [vmem:[#allocation3 + $0x10] sm:$0xf] %vm639, %v624
      %645 = vst.msk [vmem:[#allocation3 + $0x14] sm:$0xf] %vm639, %v626
      %646 = vst.msk [vmem:[#allocation3 + $0x18] sm:$0xf] %vm639, %v628
      %647 = vst.msk [vmem:[#allocation3 + $0x1c] sm:$0xf] %vm639, %v630
      %649 = vrot.lane.b32.xlu0 %v390, 12
      %v650 = vpop.permute.xlu0 %649
      %651 = vrot.lane.b32.xlu0 %v392, 12
      %v652 = vpop.permute.xlu0 %651
      %653 = vrot.lane.b32.xlu0 %v394, 12
      %v654 = vpop.permute.xlu0 %653
      %655 = vrot.lane.b32.xlu0 %v396, 12
      %v656 = vpop.permute.xlu0 %655
      %657 = vrot.lane.b32.xlu0 %v398, 12
      %v658 = vpop.permute.xlu0 %657
      %659 = vrot.lane.b32.xlu0 %v400, 12
      %v660 = vpop.permute.xlu0 %659
      %661 = vrot.lane.b32.xlu0 %v402, 12
      %v662 = vpop.permute.xlu0 %661
      %663 = vrot.lane.b32.xlu0 %v404, 12
      %v664 = vpop.permute.xlu0 %663
      %vm673 = vcmask 126048
      %674 = vst.msk [vmem:[#allocation3] sm:$0xf] %vm673, %v650
      %675 = vst.msk [vmem:[#allocation3 + $0x4] sm:$0xf] %vm673, %v652
      %676 = vst.msk [vmem:[#allocation3 + $0x8] sm:$0xf] %vm673, %v654
      %677 = vst.msk [vmem:[#allocation3 + $0xc] sm:$0xf] %vm673, %v656
      %678 = vst.msk [vmem:[#allocation3 + $0x10] sm:$0xf] %vm673, %v658
      %679 = vst.msk [vmem:[#allocation3 + $0x14] sm:$0xf] %vm673, %v660
      %680 = vst.msk [vmem:[#allocation3 + $0x18] sm:$0xf] %vm673, %v662
      %681 = vst.msk [vmem:[#allocation3 + $0x1c] sm:$0xf] %vm673, %v664
      %v683 = vshrl.u32 %v404, 16
      %v685 = vrot.slane %v683, 4
      %v686 = vshll.u32 %v404, 16
      %v688 = vrot.slane %v686, 5
      %v689 = vor.u32 %v685, %v688
      %v690 = vrot.slane %v689, 4
      %v692 = vshll.u32 %v405, 16
      %v694 = vrot.slane %v692, 5
      %v695 = vsel %vm418, %v690, %v694
      %696 = vrot.lane.b32.xlu0 %v446, 16
      %v697 = vpop.permute.xlu0 %696
      %698 = vrot.lane.b32.xlu0 %v460, 16
      %v699 = vpop.permute.xlu0 %698
      %700 = vrot.lane.b32.xlu0 %v474, 16
      %v701 = vpop.permute.xlu0 %700
      %702 = vrot.lane.b32.xlu0 %v488, 16
      %v703 = vpop.permute.xlu0 %702
      %704 = vrot.lane.b32.xlu0 %v502, 16
      %v705 = vpop.permute.xlu0 %704
      %706 = vrot.lane.b32.xlu0 %v516, 16
      %v707 = vpop.permute.xlu0 %706
      %708 = vrot.lane.b32.xlu0 %v530, 16
      %v709 = vpop.permute.xlu0 %708
      %710 = vrot.lane.b32.xlu0 %v695, 16
      %v711 = vpop.permute.xlu0 %710
      %vm720 = vcmask 158848
      %721 = vst.msk [vmem:[#allocation3] sm:$0xf] %vm720, %v697
      %722 = vst.msk [vmem:[#allocation3 + $0x4] sm:$0xf] %vm720, %v699
      %723 = vst.msk [vmem:[#allocation3 + $0x8] sm:$0xf] %vm720, %v701
      %724 = vst.msk [vmem:[#allocation3 + $0xc] sm:$0xf] %vm720, %v703
      %725 = vst.msk [vmem:[#allocation3 + $0x10] sm:$0xf] %vm720, %v705
      %726 = vst.msk [vmem:[#allocation3 + $0x14] sm:$0xf] %vm720, %v707
      %727 = vst.msk [vmem:[#allocation3 + $0x18] sm:$0xf] %vm720, %v709
      %728 = vst.msk [vmem:[#allocation3 + $0x1c] sm:$0xf] %vm720, %v711
      %v730 = vrot.slane %v404, 5
      %v731 = vrot.slane %v730, 4
      %v732 = vrot.slane %v405, 5
      %v733 = vsel %vm582, %v731, %v732
      %734 = vrot.lane.b32.xlu0 %v590, 20
      %v735 = vpop.permute.xlu0 %734
      %736 = vrot.lane.b32.xlu0 %v594, 20
      %v737 = vpop.permute.xlu0 %736
      %738 = vrot.lane.b32.xlu0 %v598, 20
      %v739 = vpop.permute.xlu0 %738
      %740 = vrot.lane.b32.xlu0 %v602, 20
      %v741 = vpop.permute.xlu0 %740
      %742 = vrot.lane.b32.xlu0 %v606, 20
      %v743 = vpop.permute.xlu0 %742
      %744 = vrot.lane.b32.xlu0 %v610, 20
      %v745 = vpop.permute.xlu0 %744
      %746 = vrot.lane.b32.xlu0 %v614, 20
      %v747 = vpop.permute.xlu0 %746
      %748 = vrot.lane.b32.xlu0 %v733, 20
      %v749 = vpop.permute.xlu0 %748
      %vm758 = vcmask 191648
      %759 = vst.msk [vmem:[#allocation3] sm:$0xf] %vm758, %v735
      %760 = vst.msk [vmem:[#allocation3 + $0x4] sm:$0xf] %vm758, %v737
      %761 = vst.msk [vmem:[#allocation3 + $0x8] sm:$0xf] %vm758, %v739
      %762 = vst.msk [vmem:[#allocation3 + $0xc] sm:$0xf] %vm758, %v741
      %763 = vst.msk [vmem:[#allocation3 + $0x10] sm:$0xf] %vm758, %v743
      %764 = vst.msk [vmem:[#allocation3 + $0x14] sm:$0xf] %vm758, %v745
      %765 = vst.msk [vmem:[#allocation3 + $0x18] sm:$0xf] %vm758, %v747
      %766 = vst.msk [vmem:[#allocation3 + $0x1c] sm:$0xf] %vm758, %v749
      %768 = vrot.lane.b32.xlu0 %v392, 24
      %v769 = vpop.permute.xlu0 %768
      %770 = vrot.lane.b32.xlu0 %v394, 24
      %v771 = vpop.permute.xlu0 %770
      %772 = vrot.lane.b32.xlu0 %v396, 24
      %v773 = vpop.permute.xlu0 %772
      %774 = vrot.lane.b32.xlu0 %v398, 24
      %v775 = vpop.permute.xlu0 %774
      %776 = vrot.lane.b32.xlu0 %v400, 24
      %v777 = vpop.permute.xlu0 %776
      %778 = vrot.lane.b32.xlu0 %v402, 24
      %v779 = vpop.permute.xlu0 %778
      %780 = vrot.lane.b32.xlu0 %v404, 24
      %v781 = vpop.permute.xlu0 %780
      %782 = vrot.lane.b32.xlu0 %v406, 24
      %v783 = vpop.permute.xlu0 %782
      %vm792 = vcmask 224448
      %793 = vst.msk [vmem:[#allocation3] sm:$0xf] %vm792, %v769
      %794 = vst.msk [vmem:[#allocation3 + $0x4] sm:$0xf] %vm792, %v771
      %795 = vst.msk [vmem:[#allocation3 + $0x8] sm:$0xf] %vm792, %v773
      %796 = vst.msk [vmem:[#allocation3 + $0xc] sm:$0xf] %vm792, %v775
      %797 = vst.msk [vmem:[#allocation3 + $0x10] sm:$0xf] %vm792, %v777
      %798 = vst.msk [vmem:[#allocation3 + $0x14] sm:$0xf] %vm792, %v779
      %799 = vst.msk [vmem:[#allocation3 + $0x18] sm:$0xf] %vm792, %v781
      %800 = vst.msk [vmem:[#allocation3 + $0x1c] sm:$0xf] %vm792, %v783
      %v802 = vshrl.u32 %v406, 16
      %v804 = vrot.slane %v802, 4
      %v805 = vshll.u32 %v406, 16
      %v807 = vrot.slane %v805, 5
      %v808 = vor.u32 %v804, %v807
      %v809 = vrot.slane %v808, 4
      %v811 = vshll.u32 %v407, 16
      %v813 = vrot.slane %v811, 5
      %v814 = vsel %vm418, %v809, %v813
      %815 = vrot.lane.b32.xlu0 %v460, 28
      %v816 = vpop.permute.xlu0 %815
      %817 = vrot.lane.b32.xlu0 %v474, 28
      %v818 = vpop.permute.xlu0 %817
      %819 = vrot.lane.b32.xlu0 %v488, 28
      %v820 = vpop.permute.xlu0 %819
      %821 = vrot.lane.b32.xlu0 %v502, 28
      %v822 = vpop.permute.xlu0 %821
      %823 = vrot.lane.b32.xlu0 %v516, 28
      %v824 = vpop.permute.xlu0 %823
      %825 = vrot.lane.b32.xlu0 %v530, 28
      %v826 = vpop.permute.xlu0 %825
      %827 = vrot.lane.b32.xlu0 %v695, 28
      %v828 = vpop.permute.xlu0 %827
      %829 = vrot.lane.b32.xlu0 %v814, 28
      %v830 = vpop.permute.xlu0 %829
      %vm839 = vcmask 257248
      %840 = vst.msk [vmem:[#allocation3] sm:$0xf] %vm839, %v816
      %841 = vst.msk [vmem:[#allocation3 + $0x4] sm:$0xf] %vm839, %v818
      %842 = vst.msk [vmem:[#allocation3 + $0x8] sm:$0xf] %vm839, %v820
      %843 = vst.msk [vmem:[#allocation3 + $0xc] sm:$0xf] %vm839, %v822
      %844 = vst.msk [vmem:[#allocation3 + $0x10] sm:$0xf] %vm839, %v824
      %845 = vst.msk [vmem:[#allocation3 + $0x14] sm:$0xf] %vm839, %v826
      %846 = vst.msk [vmem:[#allocation3 + $0x18] sm:$0xf] %vm839, %v828
      %847 = vst.msk [vmem:[#allocation3 + $0x1c] sm:$0xf] %vm839, %v830
      %v849 = vrot.slane %v406, 5
      %v850 = vrot.slane %v849, 4
      %v851 = vrot.slane %v407, 5
      %v852 = vsel %vm582, %v850, %v851
      %853 = vrot.lane.b32.xlu0 %v594, 32
      %v854 = vpop.permute.xlu0 %853
      %855 = vrot.lane.b32.xlu0 %v598, 32
      %v856 = vpop.permute.xlu0 %855
      %857 = vrot.lane.b32.xlu0 %v602, 32
      %v858 = vpop.permute.xlu0 %857
      %859 = vrot.lane.b32.xlu0 %v606, 32
      %v860 = vpop.permute.xlu0 %859
      %861 = vrot.lane.b32.xlu0 %v610, 32
      %v862 = vpop.permute.xlu0 %861
      %863 = vrot.lane.b32.xlu0 %v614, 32
      %v864 = vpop.permute.xlu0 %863
      %865 = vrot.lane.b32.xlu0 %v733, 32
      %v866 = vpop.permute.xlu0 %865
      %867 = vrot.lane.b32.xlu0 %v852, 32
      %v868 = vpop.permute.xlu0 %867
      %vm877 = vcmask 290048
      %878 = vst.msk [vmem:[#allocation3] sm:$0xf] %vm877, %v854
      %879 = vst.msk [vmem:[#allocation3 + $0x4] sm:$0xf] %vm877, %v856
      %880 = vst.msk [vmem:[#allocation3 + $0x8] sm:$0xf] %vm877, %v858
      %881 = vst.msk [vmem:[#allocation3 + $0xc] sm:$0xf] %vm877, %v860
      %882 = vst.msk [vmem:[#allocation3 + $0x10] sm:$0xf] %vm877, %v862
      %883 = vst.msk [vmem:[#allocation3 + $0x14] sm:$0xf] %vm877, %v864
      %884 = vst.msk [vmem:[#allocation3 + $0x18] sm:$0xf] %vm877, %v866
      %885 = vst.msk [vmem:[#allocation3 + $0x1c] sm:$0xf] %vm877, %v868
      %v886 = vld [vmem:[#allocation3] sm:$0xf]
      %v887 = vld [vmem:[#allocation3 + $0x4] sm:$0xf]
      %v888 = vld [vmem:[#allocation3 + $0x8] sm:$0xf]
      %v889 = vld [vmem:[#allocation3 + $0xc] sm:$0xf]
      %v890 = vld [vmem:[#allocation3 + $0x10] sm:$0xf]
      %v891 = vld [vmem:[#allocation3 + $0x14] sm:$0xf]
      %v892 = vld [vmem:[#allocation3 + $0x18] sm:$0xf]
      %v893 = vld [vmem:[#allocation3 + $0x1c] sm:$0xf]
      %v894 = vld [vmem:[%s1] sm:$0xf]
      %v895 = vld [vmem:[%s1 + $0x4] sm:$0xf]
      %v896 = vld [vmem:[%s1 + $0x8] sm:$0xf]
      %v897 = vld [vmem:[%s1 + $0xc] sm:$0xf]
      %v898 = vld [vmem:[%s1 + $0x10] sm:$0x3]
      %v907 = vunpack.c.l.b16 %v886
      %v908 = vunpack.c.l.b16 %v887
      %v909 = vunpack.c.l.b16 %v888
      %v910 = vunpack.c.l.b16 %v889
      %v911 = vunpack.c.l.b16 %v890
      %v912 = vunpack.c.l.b16 %v891
      %v913 = vunpack.c.l.b16 %v892
      %v914 = vunpack.c.l.b16 %v893
      %v915 = vpack.c.b16 %v908, %v907
      %v916 = vpack.c.b16 %v910, %v909
      %v917 = vpack.c.b16 %v912, %v911
      %v918 = vpack.c.b16 %v914, %v913
      %v924 = vunpack.c.l.b16 %v894
      %v925 = vunpack.c.l.b16 %v895
      %v926 = vunpack.c.l.b16 %v896
      %v927 = vunpack.c.l.b16 %v897
      %v928 = vunpack.c.l.b16 %v898
      %v929 = vpack.c.b16 %v925, %v924
      %v930 = vpack.c.b16 %v927, %v926
      %v931 = vpack.c.b16 %v928, %v928
      %vm934 = vcmask 293888
      %v936 = vsel %vm934, %v915, 0
      %v939 = vsel %vm934, %v916, 0
      %v942 = vsel %vm934, %v917, 0
      %v945 = vsel %vm934, %v918, 0
      %vm947 = vcmask 1041408
      %v949 = vsel %vm947, %v931, 0
      %951 = vmatprep.subr.bf16.mxu0 0
      %952 = vmatpush1.bf16.msra.mxu0 %v929
      %953 = vmatprep.subr.bf16.mxu0 0
      %954 = vmatpush1.bf16.msra.mxu0 %v930
      %955 = vmatprep.subr.bf16.mxu0 0
      %956 = vmatpush1.bf16.msra.mxu0 %v949
      %957 = vmatprep.subr.bf16.mxu0 0
      %958 = vmatpush1.bf16.msra.mxu0 0
      %959 = vmatprep.subr.bf16.mxu0 0
      %960 = vmatpush1.bf16.msra.mxu0 0
      %961 = vmatprep.subr.bf16.mxu0 0
      %962 = vmatpush1.bf16.msra.mxu0 0
      %963 = vmatprep.subr.bf16.mxu0 0
      %964 = vmatpush1.bf16.msra.mxu0 0
      %965 = vmatprep.subr.bf16.mxu0 0
      %966 = vmatpush1.bf16.msra.mxu0 0
      %967 = vmatprep.subr.bf16.mxu0 0
      %968 = vmatpush1.bf16.msra.mxu0 0
      %969 = vmatprep.subr.bf16.mxu0 0
      %970 = vmatpush1.bf16.msra.mxu0 0
      %971 = vmatprep.subr.bf16.mxu0 0
      %972 = vmatpush1.bf16.msra.mxu0 0
      %973 = vmatprep.subr.bf16.mxu0 0
      %974 = vmatpush1.bf16.msra.mxu0 0
      %975 = vmatprep.subr.bf16.mxu0 0
      %976 = vmatpush1.bf16.msra.mxu0 0
      %977 = vmatprep.subr.bf16.mxu0 0
      %978 = vmatpush1.bf16.msra.mxu0 0
      %979 = vmatprep.subr.bf16.mxu0 0
      %980 = vmatpush1.bf16.msra.mxu0 0
      %981 = vmatprep.subr.bf16.mxu0 0
      %982 = vmatpush1.bf16.msra.mxu0 0
      %983 = vmatprep.mubr.bf16.mxu0 0
      %984 = vmatmul.mubr.bf16.gmra.mrb[0].mxu0 %v936
      %v985 = vpop.f32.mrb[0].mxu0
      %v986 = vadd.f32 0.0, %v985
      %v987 = vpop.f32.mrb[0].mxu0
      %v988 = vpop.f32.mrb[0].mxu0
      %v989 = vadd.f32 0.0, %v988
      %v990 = vpop.f32.mrb[0].mxu0
      %991 = vmatprep.mubr.bf16.mxu0 0
      %992 = vmatmul.mubr.bf16.gmra.mrb[0].mxu0 %v939
      %v993 = vpop.f32.mrb[0].mxu0
      %v994 = vadd.f32 0.0, %v993
      %v995 = vpop.f32.mrb[0].mxu0
      %v996 = vpop.f32.mrb[0].mxu0
      %v997 = vadd.f32 0.0, %v996
      %v998 = vpop.f32.mrb[0].mxu0
      %999 = vmatprep.mubr.bf16.mxu0 0
      %1000 = vmatmul.mubr.bf16.gmra.mrb[0].mxu0 %v942
      %v1001 = vpop.f32.mrb[0].mxu0
      %v1002 = vadd.f32 0.0, %v1001
      %v1003 = vpop.f32.mrb[0].mxu0
      %v1004 = vpop.f32.mrb[0].mxu0
      %v1005 = vadd.f32 0.0, %v1004
      %v1006 = vpop.f32.mrb[0].mxu0
      %1007 = vmatprep.mubr.bf16.mxu0 0
      %1008 = vmatmul.mubr.bf16.gmra.mrb[0].mxu0 %v945
      %v1009 = vpop.f32.mrb[0].mxu0
      %v1010 = vadd.f32 0.0, %v1009
      %v1011 = vpop.f32.mrb[0].mxu0
      %v1012 = vpop.f32.mrb[0].mxu0
      %v1013 = vadd.f32 0.0, %v1012
      %v1014 = vpop.f32.mrb[0].mxu0
      %1015 = vdwg.mxu0
      %v1016 = vld [vmem:[%s2] sm:$0x1]
      %v1017 = vld [vmem:[%s2 + $0x1] sm:$0x1]
      %v1018 = vld [vmem:[%s2 + $0x2] sm:$0x1]
      %vm1019 = vcmask 64512
      %v1020 = vsel %vm1019, %v986, 0.0
      %v1021 = vsel %vm1019, %v989, 0.0
      %v1022 = vadd.f32 %v1020, %v1021
      %v1023 = vsel %vm1019, %v994, 0.0
      %v1024 = vadd.f32 %v1022, %v1023
      %v1025 = vsel %vm1019, %v997, 0.0
      %v1026 = vadd.f32 %v1024, %v1025
      %v1027 = vsel %vm1019, %v1002, 0.0
      %v1028 = vadd.f32 %v1026, %v1027
      %v1029 = vsel %vm1019, %v1005, 0.0
      %v1030 = vadd.f32 %v1028, %v1029
      %v1031 = vsel %vm1019, %v1010, 0.0
      %v1032 = vadd.f32 %v1030, %v1031
      %v1033 = vsel %vm1019, %v1013, 0.0
      %v1034 = vadd.f32 %v1032, %v1033
      %1035 = vadd.xlane.f32.xlu0 %v1034
      %v1036 = vpop.xlane.xlu0 %1035
      %v1037 = vrot.slane %v1036, 4
      %v1038 = vadd.f32 %v1036, %v1037
      %v1039 = vrot.slane %v1038, 2
      %v1040 = vadd.f32 %v1038, %v1039
      %v1041 = vrot.slane %v1040, 1
      %v1042 = vadd.f32 %v1040, %v1041
      %s1043 = vtos %v1042
      %vm1044 = vcmask 57344
      %v1045 = vsel %vm1044, %v1016, 0.0
      %1046 = vadd.xlane.f32.xlu0 %v1045
      %v1047 = vpop.xlane.xlu0 %1046
      %v1048 = vrot.slane %v1047, 4
      %v1049 = vadd.f32 %v1047, %v1048
      %v1050 = vrot.slane %v1049, 2
      %v1051 = vadd.f32 %v1049, %v1050
      %v1052 = vrot.slane %v1051, 1
      %v1053 = vadd.f32 %v1051, %v1052
      %s1054 = vtos %v1053
      %s1055 = smul.f32 %s1054, 64.0
      %s1056 = sadd.f32 %s1043, %s1055
      %s1057 = smul.f32 %s1056, 0.001953125
      %v1058 = vstv %s1057
      %v1059 = vsub.f32 %v1016, %v1058
      %v1060 = vlaneseq
      %v1061 = vshrl.u32 %v1060, 7
      %v1062 = vsub.s32 0, %v1061
      %v1063 = vrot.slane %v1059, %v1062
      %v1064 = vadd.f32 %v986, %v1063
      %v1065 = vadd.f32 %v989, %v1063
      %v1066 = vadd.f32 %v994, %v1063
      %v1067 = vadd.f32 %v997, %v1063
      %v1068 = vadd.f32 %v1002, %v1063
      %v1069 = vadd.f32 %v1005, %v1063
      %v1070 = vadd.f32 %v1010, %v1063
      %v1071 = vadd.f32 %v1013, %v1063
      %v1072 = vmul.f32 %v1064, %v1064
      %v1073 = vmul.f32 %v1065, %v1065
      %v1074 = vmul.f32 %v1066, %v1066
      %v1075 = vmul.f32 %v1067, %v1067
      %v1076 = vmul.f32 %v1068, %v1068
      %v1077 = vmul.f32 %v1069, %v1069
      %v1078 = vmul.f32 %v1070, %v1070
      %v1079 = vmul.f32 %v1071, %v1071
      %v1080 = vsel %vm1019, %v1072, 0.0
      %v1081 = vsel %vm1019, %v1073, 0.0
      %v1082 = vadd.f32 %v1080, %v1081
      %v1083 = vsel %vm1019, %v1074, 0.0
      %v1084 = vadd.f32 %v1082, %v1083
      %v1085 = vsel %vm1019, %v1075, 0.0
      %v1086 = vadd.f32 %v1084, %v1085
      %v1087 = vsel %vm1019, %v1076, 0.0
      %v1088 = vadd.f32 %v1086, %v1087
      %v1089 = vsel %vm1019, %v1077, 0.0
      %v1090 = vadd.f32 %v1088, %v1089
      %v1091 = vsel %vm1019, %v1078, 0.0
      %v1092 = vadd.f32 %v1090, %v1091
      %v1093 = vsel %vm1019, %v1079, 0.0
      %v1094 = vadd.f32 %v1092, %v1093
      %1095 = vadd.xlane.f32.xlu0 %v1094
      %v1096 = vpop.xlane.xlu0 %1095
      %v1097 = vrot.slane %v1096, 4
      %v1098 = vadd.f32 %v1096, %v1097
      %v1099 = vrot.slane %v1098, 2
      %v1100 = vadd.f32 %v1098, %v1099
      %v1101 = vrot.slane %v1100, 1
      %v1102 = vadd.f32 %v1100, %v1101
      %s1103 = vtos %v1102
      %s1104 = smul.f32 %s1103, 0.001953125
      %s1105 = sadd.f32 %s1104, 1e-05
      %v1106 = vstv %s1105
      %v1107 = vrsqrt.pop %v1106
      %s1108 = vtos %v1107
      %v1109 = vstv %s1108
      %v1110 = vmul.f32 %v1017, %v1109
      %v1111 = vlaneseq
      %v1112 = vshrl.u32 %v1111, 7
      %v1113 = vsub.s32 0, %v1112
      %v1114 = vrot.slane %v1110, %v1113
      %v1115 = vmul.f32 %v1064, %v1114
      %v1116 = vmul.f32 %v1065, %v1114
      %v1117 = vmul.f32 %v1066, %v1114
      %v1118 = vmul.f32 %v1067, %v1114
      %v1119 = vmul.f32 %v1068, %v1114
      %v1120 = vmul.f32 %v1069, %v1114
      %v1121 = vmul.f32 %v1070, %v1114
      %v1122 = vmul.f32 %v1071, %v1114
      %v1123 = vlaneseq
      %v1124 = vshrl.u32 %v1123, 7
      %v1125 = vsub.s32 0, %v1124
      %v1126 = vrot.slane %v1018, %v1125
      %v1127 = vadd.f32 %v1115, %v1126
      %v1128 = vadd.f32 %v1116, %v1126
      %v1129 = vadd.f32 %v1117, %v1126
      %v1130 = vadd.f32 %v1118, %v1126
      %v1131 = vadd.f32 %v1119, %v1126
      %v1132 = vadd.f32 %v1120, %v1126
      %v1133 = vadd.f32 %v1121, %v1126
      %v1134 = vadd.f32 %v1122, %v1126
      %v1135 = vmax.f32 %v1127, 0.0
      %v1136 = vmax.f32 %v1128, 0.0
      %v1137 = vmax.f32 %v1129, 0.0
      %v1138 = vmax.f32 %v1130, 0.0
      %v1139 = vmax.f32 %v1131, 0.0
      %v1140 = vmax.f32 %v1132, 0.0
      %v1141 = vmax.f32 %v1133, 0.0
      %v1142 = vmax.f32 %v1134, 0.0
      %1143 = vst.msk [vmem:[%s170] sm:$0xff] %vm1019, %v1135
      %1144 = vst.msk [vmem:[%s170 + $0x8] sm:$0xff] %vm1019, %v1136
      %1145 = vst.msk [vmem:[%s170 + $0x10] sm:$0xff] %vm1019, %v1137
      %1146 = vst.msk [vmem:[%s170 + $0x18] sm:$0xff] %vm1019, %v1138
      %1147 = vst.msk [vmem:[%s170 + $0x20] sm:$0xff] %vm1019, %v1139
      %1148 = vst.msk [vmem:[%s170 + $0x28] sm:$0xff] %vm1019, %v1140
      %1149 = vst.msk [vmem:[%s170 + $0x30] sm:$0xff] %vm1019, %v1141
      %1150 = vst.msk [vmem:[%s170 + $0x38] sm:$0xff] %vm1019, %v1142
      %p1151 = scmp.lt.s32.totalorder %s14, 1
      %s1152 = scalar_select %p1151, %s14, 1
      %s1153 = smul.addr %s1152, 8
      %s1154 = smul.addr %s1153, 8
      %s1155 = scalar_lea.vmem %s3, %s1154
      // Predicated region
      $region33: #{tpu_custom_call.1} parent=31 // pred_check
        %p1156 = pneg %p100
      $region34: #{tpu_custom_call.1} parent=31 // pred_check_branch
        %1158 = sbr.rel (%p1156) target = $region36
      $region35: #{tpu_custom_call.1} parent=31 // pred_region
        _
      $region36: #{tpu_custom_call.1} parent=31 // pred_fallthru
        _
    $region32: #{tpu_custom_call.1} parent=5 // pred_fallthru
      _
    %p1159 = scmp.le.s32.totalorder 2, %s9
    // Predicated region
    $region37: #{tpu_custom_call.1} parent=5 // pred_check
      %p1160 = pneg %p1159
    $region38: #{tpu_custom_call.1} parent=5 // pred_check_branch
      %1162 = sbr.rel (%p1160) target = $region40
    $region39: #{tpu_custom_call.1} parent=5 // pred_region
      %s1163 = ssub.s32 %s9, 2
      // Predicated region
      $region41: #{tpu_custom_call.1} parent=39 // pred_check
        %p1164 = pneg %p106
      $region42: #{tpu_custom_call.1} parent=39 // pred_check_branch
        %1166 = sbr.rel (%p1164) target = $region44
      $region43: #{tpu_custom_call.1} parent=39 // pred_region
        %p1167 = scmp.lt.s32.totalorder %s15, 1
        %s1168 = scalar_select %p1167, %s15, 1
        %s1169 = smul.addr %s1168, 8
        %s1170 = smul.addr %s1169, 8
        %s1171 = scalar_lea.vmem %s3, %s1170
      $region44: #{tpu_custom_call.1} parent=39 // pred_fallthru
        _
    $region40: #{tpu_custom_call.1} parent=5 // pred_fallthru
      _
  $region6: #{tpu_custom_call.1} parent=0 // loop_footer
    %s13 = sadd.s32 1, %s9
  $region7: #{tpu_custom_call.1} parent=0 // loop_footer_branch
    %8 = sbr.rel target = $region3
  $region8: #{tpu_custom_call.1} parent=0 // loop_exit
    _

</llo_original>
